<compile_context>
chip_gen: v5e
topology: v5e:2x2
jax: 0.10.0
libtpu: 0.0.40
codegen_flags: <defaults>
</compile_context>

<pallas_src>
import functools

import jax
import jax.numpy as jnp
from jax.experimental import pallas as pl
from jax.experimental.pallas import tpu as pltpu


# ----------------------------------------------------------------------------
# helpers
# ----------------------------------------------------------------------------
def _cdiv(a, b):
    return (a + b - 1) // b


def _round_up(a, m):
    return _cdiv(a, m) * m


def _vmem_params():
    """(vmem_limit_bytes, pipelined working-set budget, prefer>=2 row tiles)."""
    cap = 64 * 1024 * 1024
    try:
        info = pltpu.get_tpu_info()
        cap = int(getattr(info, "vmem_capacity_bytes", cap) or cap)
    except Exception:
        pass
    if cap <= 64 * 1024 * 1024:
        # v7x-class: 64 MiB physical VMEM, 2 TensorCores per chip.
        return 40 * 1024 * 1024, 18 * 1024 * 1024, True
    # v5e / v6e: 128 MiB VMEM, single TensorCore.
    return 96 * 1024 * 1024, 64 * 1024 * 1024, False


def _choose_tiles(n_rows, n_contract, K, lanes_out, gy_bytes, budget, prefer_even):
    """Pick (row_tile, contraction_tile) whose pipelined working set fits."""

    def working_set(tn, tc):
        return (2 * K * tn * tc * gy_bytes          # G tile, double-buffered
                + 2 * K * tc * lanes_out * gy_bytes  # Y tile, double-buffered
                + 3 * tn * lanes_out * 4             # out (x2) + acc scratch
                + 2 * lanes_out * 4)                 # bias

    # Prefer the whole contraction resident (single "arbitrary" step) and the
    # largest 8-aligned row tile <= 1024 that fits the budget.
    tc = n_contract
    tn = max(8, min(_round_up(n_rows, 8), 1024))
    while tn > 8 and working_set(tn, tc) > budget:
        tn = max(8, ((tn // 2) // 8) * 8)

    if working_set(tn, tc) > budget and n_contract > 128:
        # Contraction too large for VMEM even at tn=8 -> tile it as well
        # (second grid axis, f32 accumulator, 128-aligned column tiles).
        tc = max(128, (min(n_contract, 2048) // 128) * 128)
        tn = max(8, min(_round_up(n_rows, 8), 1024))
        while working_set(tn, tc) > budget and (tn > 8 or tc > 128):
            if tn > 8:
                tn = max(8, ((tn // 2) // 8) * 8)
            else:
                tc = max(128, ((tc // 2) // 128) * 128)

    if prefer_even and n_rows >= 16:
        # v7x: the "parallel" row axis is split across 2 TensorCores; make
        # sure there are at least 2 row tiles so neither core sits idle.
        while _cdiv(n_rows, tn) < 2 and tn > 8:
            tn = max(8, _round_up(_cdiv(tn, 2), 8))
    return tn, tc


# ----------------------------------------------------------------------------
# Pallas kernel: out[tile] = sum_k G[k, tile_rows, tile_cols] @ Y[k, tile_cols]
# Grid = (row_tiles "parallel", contraction_tiles "arbitrary").
# ----------------------------------------------------------------------------
def _gcn_kernel(g_ref, y_ref, b_ref, out_ref, acc_ref, *, K):
    # g_ref:  [K, tn, tc]          row/col tile of every support matrix
    # y_ref:  [K, tc, L]           per-support (x @ W) with batch in lanes, L%128==0
    # b_ref:  [1, L]               lane-packed per-batch bias
    # out_ref:[tn, L]              lane-dense output tile
    # acc_ref:[tn, L] f32          accumulator across the contraction grid axis
    j = pl.program_id(1)

    @pl.when(j == 0)
    def _():
        acc_ref[...] = jnp.zeros_like(acc_ref)

    acc = acc_ref[...]
    for k in range(K):  # K is tiny & static -> unrolled, leading-axis reads
        acc = acc + jnp.dot(g_ref[k], y_ref[k],
                            preferred_element_type=jnp.float32)
    acc_ref[...] = acc

    @pl.when(j == pl.num_programs(1) - 1)
    def _():
        out_ref[...] = (acc_ref[...] + b_ref[...]).astype(out_ref.dtype)


def meta_gcn_core(G, Y, bias_row, *, row_tile=None, col_tile=None,
                  use_bf16=False):
    """out[n, :] = sum_k G[k, n, :] @ Y[k] + bias_row   (lane-padded)."""
    K, N, _ = G.shape
    lanes_out = Y.shape[-1]                      # already a multiple of 128
    assert lanes_out % 128 == 0

    vmem_limit, budget, prefer_even = _vmem_params()
    gy_bytes = 2 if use_bf16 else 4
    tn, tc = _choose_tiles(N, N, K, lanes_out, gy_bytes, budget, prefer_even)
    if row_tile is not None:
        tn = max(8, _round_up(row_tile, 8))
    if col_tile is not None:
        assert col_tile == N or col_tile % 128 == 0
        tc = col_tile

    n_rows_pad = _round_up(N, tn)
    n_ctr_pad = N if tc == N else _round_up(N, tc)

    if use_bf16:
        G = G.astype(jnp.bfloat16)
        Y = Y.astype(jnp.bfloat16)

    # Pad only the axes that need it; zeros keep the math exact (padded G rows
    # only produce output rows that get sliced off, padded contraction rows of
    # Y are zero so they contribute nothing).
    if n_rows_pad != N or n_ctr_pad != N:
        G = jnp.pad(G, ((0, 0), (0, n_rows_pad - N), (0, n_ctr_pad - N)))
    if n_ctr_pad != N:
        Y = jnp.pad(Y, ((0, 0), (0, n_ctr_pad - N), (0, 0)))

    grid = (n_rows_pad // tn, n_ctr_pad // tc)
    kernel = functools.partial(_gcn_kernel, K=K)
    out = pl.pallas_call(
        kernel,
        out_shape=jax.ShapeDtypeStruct((n_rows_pad, lanes_out), jnp.float32),
        grid=grid,
        in_specs=[
            pl.BlockSpec((K, tn, tc), lambda i, j: (0, i, j)),          # G tile
            pl.BlockSpec((K, tc, lanes_out), lambda i, j: (0, j, 0)),   # Y tile
            pl.BlockSpec((1, lanes_out), lambda i, j: (0, 0)),          # bias
        ],
        out_specs=pl.BlockSpec((tn, lanes_out), lambda i, j: (i, 0)),
        scratch_shapes=[pltpu.VMEM((tn, lanes_out), jnp.float32)],
        compiler_params=pltpu.CompilerParams(
            dimension_semantics=("parallel", "arbitrary"),
            vmem_limit_bytes=vmem_limit,
        ),
    )(G, Y, bias_row)
    return out[:N]


# ----------------------------------------------------------------------------
# Full module forward
# ----------------------------------------------------------------------------
def _mlp(xm, w1, b1, w2, b2):
    h = jnp.maximum(xm @ w1 + b1, 0.0)
    return h @ w2 + b2


def meta_gcn_forward(params, G, x, x_meta, *, K, dim_in, dim_out,
                     row_tile=None, col_tile=None, use_bf16=False):
    B, N, _ = x.shape

    # Meta-learner MLPs: tiny -> plain XLA (fused with the Y precompute below).
    w_flat = _mlp(x_meta, params["w_l1_w"], params["w_l1_b"],
                  params["w_l2_w"], params["w_l2_b"])          # [B, K*dim_in*dim_out]
    bias = _mlp(x_meta, params["b_l1_w"], params["b_l1_b"],
                params["b_l2_w"], params["b_l2_b"])            # [B, dim_out]

    # Precompute Y[k, m, b*dim_out + o] = sum_i x[b, m, i] * W[b, k, i, o]
    # (small: [K, N, B*dim_out]) so the Pallas kernel reduces to lane-dense
    # matmuls of G against Y.
    w4 = w_flat.reshape(B, K, dim_in, dim_out)
    Y = jnp.einsum("bni,bkio->knbo", x, w4).reshape(K, N, B * dim_out)

    lanes_out = B * dim_out
    lanes_pad = _round_up(lanes_out, 128)       # lane-dense stores/accumulator
    if lanes_pad != lanes_out:
        Y = jnp.pad(Y, ((0, 0), (0, 0), (0, lanes_pad - lanes_out)))
    bias_row = jnp.zeros((1, lanes_pad), jnp.float32)
    bias_row = bias_row.at[0, :lanes_out].set(bias.reshape(-1))

    out_all = meta_gcn_core(G.astype(jnp.float32), Y.astype(jnp.float32),
                            bias_row, row_tile=row_tile, col_tile=col_tile,
                            use_bf16=use_bf16)                  # [N, lanes_pad]
    out = out_all[:, :lanes_out].reshape(N, B, dim_out)
    return out.transpose(1, 0, 2)                               # [B, N, dim_out]


# Pure-JAX reference (mirrors the PyTorch module) for verification.
def meta_gcn_reference(params, G, x, x_meta, *, K, dim_in, dim_out):
    B = x.shape[0]
    W = _mlp(x_meta, params["w_l1_w"], params["w_l1_b"],
             params["w_l2_w"], params["w_l2_b"]).reshape(B, K * dim_in, dim_out)
    b = _mlp(x_meta, params["b_l1_w"], params["b_l1_b"],
             params["b_l2_w"], params["b_l2_b"]).reshape(B, 1, dim_out)
    supports = [jnp.einsum("ij,bjp->bip", G[k], x) for k in range(K)]
    support_cat = jnp.concatenate(supports, axis=-1)        # [B, N, K*dim_in]
    return jnp.einsum("bnc,bcd->bnd", support_cat, W) + b


def _make_params(key, dim_meta, hidden, K, dim_in, dim_out):
    ks = jax.random.split(key, 8)
    return {
        "w_l1_w": jax.random.normal(ks[0], (dim_meta, hidden), jnp.float32) * 0.1,
        "w_l1_b": jax.random.normal(ks[1], (hidden,), jnp.float32) * 0.1,
        "w_l2_w": jax.random.normal(ks[2], (hidden, K * dim_in * dim_out),
                                    jnp.float32) * 0.1,
        "w_l2_b": jax.random.normal(ks[3], (K * dim_in * dim_out,), jnp.float32) * 0.1,
        "b_l1_w": jax.random.normal(ks[4], (dim_meta, hidden), jnp.float32) * 0.1,
        "b_l1_b": jax.random.normal(ks[5], (hidden,), jnp.float32) * 0.1,
        "b_l2_w": jax.random.normal(ks[6], (hidden, dim_out), jnp.float32) * 0.1,
        "b_l2_b": jax.random.normal(ks[7], (dim_out,), jnp.float32) * 0.1,
    }


if __name__ == "__main__":
    key = jax.random.PRNGKey(0)

    # --- Case 1: small graph, multi row-tile grid, single contraction tile ---
    B, N, dim_in, dim_out, K, dim_meta, hidden = 2, 32, 4, 8, 3, 6, 64
    k_p, k_g, k_x, k_m, key = jax.random.split(key, 5)
    params = _make_params(k_p, dim_meta, hidden, K, dim_in, dim_out)
    G = jax.random.normal(k_g, (K, N, N), jnp.float32)
    x = jax.random.normal(k_x, (B, N, dim_in), jnp.float32)
    x_meta = jax.random.normal(k_m, (B, dim_meta), jnp.float32)

    out = meta_gcn_forward(params, G, x, x_meta, K=K, dim_in=dim_in,
                           dim_out=dim_out, row_tile=16)
    out = jax.block_until_ready(out)
    ref = meta_gcn_reference(params, G, x, x_meta, K=K, dim_in=dim_in,
                             dim_out=dim_out)
    assert out.shape == (B, N, dim_out)
    assert jnp.allclose(out, ref, atol=1e-3, rtol=1e-3), "case1 mismatch"

    # --- Case 2: exercises row padding, contraction ("arbitrary") tiling and
    # the f32 accumulator path (N=200 padded to 256, tiles 64x128, grid 4x2) --
    B2, N2, K2 = 2, 200, 3
    k_p, k_g, k_x, k_m, key = jax.random.split(key, 5)
    params2 = _make_params(k_p, dim_meta, hidden, K2, dim_in, dim_out)
    G2 = jax.random.normal(k_g, (K2, N2, N2), jnp.float32)
    x2 = jax.random.normal(k_x, (B2, N2, dim_in), jnp.float32)
    x_meta2 = jax.random.normal(k_m, (B2, dim_meta), jnp.float32)

    out2 = meta_gcn_forward(params2, G2, x2, x_meta2, K=K2, dim_in=dim_in,
                            dim_out=dim_out, row_tile=64, col_tile=128)
    out2 = jax.block_until_ready(out2)
    ref2 = meta_gcn_reference(params2, G2, x2, x_meta2, K=K2, dim_in=dim_in,
                              dim_out=dim_out)
    assert out2.shape == (B2, N2, dim_out)
    assert jnp.allclose(out2, ref2, atol=1e-3, rtol=1e-3), "case2 mismatch"

    print("KERNEL_OK")
</pallas_src>

<mosaic_0001>
module attributes {stable_mosaic.version = 11 : i64} {
  func.func @_gcn_kernel(%arg0: i32, %arg1: i32, %arg2: memref<3x16x32xf32, #tpu.memory_space<vmem>>, %arg3: memref<3x32x128xf32, #tpu.memory_space<vmem>>, %arg4: memref<1x128xf32, #tpu.memory_space<vmem>>, %arg5: memref<16x128xf32, #tpu.memory_space<vmem>>, %arg6: memref<16x128xf32, #tpu.memory_space<vmem>>) attributes {dimension_semantics = [#tpu.dimension_semantics<parallel>, #tpu.dimension_semantics<arbitrary>], iteration_bounds = array<i64: 2, 1>, scalar_prefetch = 0 : i64, scratch_operands = 1 : i64, tpu.core_type = #tpu.core_type<tc>, window_params = [{transform_indices = @transform_0, window_bounds = array<i64: 3, 16, 32>}, {transform_indices = @transform_1, window_bounds = array<i64: 3, 32, 128>}, {pipeline_mode = #tpu.pipeline_mode<synchronous>, transform_indices = @transform_2, window_bounds = array<i64: 1, 128>}, {transform_indices = @transform_3, window_bounds = array<i64: 16, 128>}]} {
    %c0_i32 = arith.constant 0 : i32
    %0 = arith.cmpi eq, %arg1, %c0_i32 : i32
    %1 = arith.extui %0 : i1 to i32
    %c0_i32_0 = arith.constant 0 : i32
    %2 = arith.cmpi ne, %1, %c0_i32_0 : i32
    scf.if %2 {
      %cst_24 = arith.constant 0.000000e+00 : f32
      %26 = vector.broadcast %cst_24 : f32 to vector<16x128xf32>
      %c0_25 = arith.constant 0 : index
      %c0_26 = arith.constant 0 : index
      %27 = vector.load %arg6[%c0_25, %c0_26] : memref<16x128xf32, #tpu.memory_space<vmem>>, vector<16x128xf32>
      tpu.vector_store %arg6[%c0_25, %c0_26], %26 {strides = array<i32>} : memref<16x128xf32, #tpu.memory_space<vmem>>, vector<16x128xf32>,
    } else {
    }
    %c0 = arith.constant 0 : index
    %c0_1 = arith.constant 0 : index
    %3 = vector.load %arg6[%c0, %c0_1] : memref<16x128xf32, #tpu.memory_space<vmem>>, vector<16x128xf32>
    %c0_2 = arith.constant 0 : index
    %c0_3 = arith.constant 0 : index
    %c0_4 = arith.constant 0 : index
    %4 = vector.load %arg2[%c0_2, %c0_3, %c0_4] : memref<3x16x32xf32, #tpu.memory_space<vmem>>, vector<1x16x32xf32>
    %5 = vector.shape_cast %4 : vector<1x16x32xf32> to vector<16x32xf32>
    %c0_5 = arith.constant 0 : index
    %c0_6 = arith.constant 0 : index
    %c0_7 = arith.constant 0 : index
    %6 = vector.load %arg3[%c0_5, %c0_6, %c0_7] : memref<3x32x128xf32, #tpu.memory_space<vmem>>, vector<1x32x128xf32>
    %7 = vector.shape_cast %6 : vector<1x32x128xf32> to vector<32x128xf32>
    %cst = arith.constant dense<0.000000e+00> : vector<16x128xf32>
    %8 = tpu.matmul %5, %7, %cst {dimension_numbers = #tpu.dot_dimension_numbers<[1], [0], [0], [1], [0, 0, 1, 1], [], []>} : vector<16x32xf32>, vector<32x128xf32>, vector<16x128xf32> -> vector<16x128xf32>
    %9 = arith.addf %3, %8 : vector<16x128xf32>
    %c1 = arith.constant 1 : index
    %c0_8 = arith.constant 0 : index
    %c0_9 = arith.constant 0 : index
    %10 = vector.load %arg2[%c1, %c0_8, %c0_9] : memref<3x16x32xf32, #tpu.memory_space<vmem>>, vector<1x16x32xf32>
    %11 = vector.shape_cast %10 : vector<1x16x32xf32> to vector<16x32xf32>
    %c1_10 = arith.constant 1 : index
    %c0_11 = arith.constant 0 : index
    %c0_12 = arith.constant 0 : index
    %12 = vector.load %arg3[%c1_10, %c0_11, %c0_12] : memref<3x32x128xf32, #tpu.memory_space<vmem>>, vector<1x32x128xf32>
    %13 = vector.shape_cast %12 : vector<1x32x128xf32> to vector<32x128xf32>
    %cst_13 = arith.constant dense<0.000000e+00> : vector<16x128xf32>
    %14 = tpu.matmul %11, %13, %cst_13 {dimension_numbers = #tpu.dot_dimension_numbers<[1], [0], [0], [1], [0, 0, 1, 1], [], []>} : vector<16x32xf32>, vector<32x128xf32>, vector<16x128xf32> -> vector<16x128xf32>
    %15 = arith.addf %9, %14 : vector<16x128xf32>
    %c2 = arith.constant 2 : index
    %c0_14 = arith.constant 0 : index
    %c0_15 = arith.constant 0 : index
    %16 = vector.load %arg2[%c2, %c0_14, %c0_15] : memref<3x16x32xf32, #tpu.memory_space<vmem>>, vector<1x16x32xf32>
    %17 = vector.shape_cast %16 : vector<1x16x32xf32> to vector<16x32xf32>
    %c2_16 = arith.constant 2 : index
    %c0_17 = arith.constant 0 : index
    %c0_18 = arith.constant 0 : index
    %18 = vector.load %arg3[%c2_16, %c0_17, %c0_18] : memref<3x32x128xf32, #tpu.memory_space<vmem>>, vector<1x32x128xf32>
    %19 = vector.shape_cast %18 : vector<1x32x128xf32> to vector<32x128xf32>
    %cst_19 = arith.constant dense<0.000000e+00> : vector<16x128xf32>
    %20 = tpu.matmul %17, %19, %cst_19 {dimension_numbers = #tpu.dot_dimension_numbers<[1], [0], [0], [1], [0, 0, 1, 1], [], []>} : vector<16x32xf32>, vector<32x128xf32>, vector<16x128xf32> -> vector<16x128xf32>
    %21 = arith.addf %15, %20 : vector<16x128xf32>
    %c0_20 = arith.constant 0 : index
    %c0_21 = arith.constant 0 : index
    %22 = vector.load %arg6[%c0_20, %c0_21] : memref<16x128xf32, #tpu.memory_space<vmem>>, vector<16x128xf32>
    tpu.vector_store %arg6[%c0_20, %c0_21], %21 {strides = array<i32>} : memref<16x128xf32, #tpu.memory_space<vmem>>, vector<16x128xf32>,
    %c0_i32_22 = arith.constant 0 : i32
    %23 = arith.cmpi eq, %arg1, %c0_i32_22 : i32
    %24 = arith.extui %23 : i1 to i32
    %c0_i32_23 = arith.constant 0 : i32
    %25 = arith.cmpi ne, %24, %c0_i32_23 : i32
    scf.if %25 {
      %c0_24 = arith.constant 0 : index
      %c0_25 = arith.constant 0 : index
      %26 = vector.load %arg6[%c0_24, %c0_25] : memref<16x128xf32, #tpu.memory_space<vmem>>, vector<16x128xf32>
      %c0_26 = arith.constant 0 : index
      %c0_27 = arith.constant 0 : index
      %27 = vector.load %arg4[%c0_26, %c0_27] : memref<1x128xf32, #tpu.memory_space<vmem>>, vector<1x128xf32>
      %28 = vector.broadcast %27 : vector<1x128xf32> to vector<16x128xf32>
      %29 = arith.addf %26, %28 : vector<16x128xf32>
      %c0_28 = arith.constant 0 : index
      %c0_29 = arith.constant 0 : index
      %30 = vector.load %arg5[%c0_28, %c0_29] : memref<16x128xf32, #tpu.memory_space<vmem>>, vector<16x128xf32>
      tpu.vector_store %arg5[%c0_28, %c0_29], %29 {strides = array<i32>} : memref<16x128xf32, #tpu.memory_space<vmem>>, vector<16x128xf32>,
    } else {
    }
    return
  }
  func.func @transform_0(%arg0: i32, %arg1: i32) -> (i32, i32, i32) {
    %c0_i32 = arith.constant 0 : i32
    %c0_i32_0 = arith.constant 0 : i32
    return %c0_i32, %arg0, %arg1 : i32, i32, i32
  }
  func.func @transform_1(%arg0: i32, %arg1: i32) -> (i32, i32, i32) {
    %c0_i32 = arith.constant 0 : i32
    %c0_i32_0 = arith.constant 0 : i32
    %c0_i32_1 = arith.constant 0 : i32
    return %c0_i32, %arg1, %c0_i32_0 : i32, i32, i32
  }
  func.func @transform_2(%arg0: i32, %arg1: i32) -> (i32, i32) {
    %c0_i32 = arith.constant 0 : i32
    %c0_i32_0 = arith.constant 0 : i32
    %c0_i32_1 = arith.constant 0 : i32
    return %c0_i32, %c0_i32_0 : i32, i32
  }
  func.func @transform_3(%arg0: i32, %arg1: i32) -> (i32, i32) {
    %c0_i32 = arith.constant 0 : i32
    %c0_i32_0 = arith.constant 0 : i32
    return %arg0, %c0_i32 : i32, i32
  }
}

</mosaic_0001>

<llo_original>
// kernel: tpu_custom_call.1
$region0: #{tpu_custom_call.1}
  #allocation0 [shape = 'u32[]', space=smem, size = 0x4, offset = 0x4, fixed_abs, tag = 'smem constant byte address 0x4 - core index']
  #allocation1 [shape = 'u32[72,128]{1,0:T(1,128)}', space=vmem, size = 0x9000, scoped, tag = 'internal scratch']
  #allocation2 [shape = 'f32[16,128]{1,0:T(8,128)}', space=vmem, size = 0x2000, scoped, tag = 'scratch operand']
  #allocation9 [shape = 's32[]', space=sflag, size = 0x4, offset = 0, fixed_abs, tag = 'sflag constant byte address 0x0 - dummy sync flag']
  %s0 = inlined_call_operand.hbm [shape: f32[3,32,32], index: 0, kind: input, shape index: {}]
  %s1 = inlined_call_operand.hbm [shape: f32[3,32,128], index: 1, kind: input, shape index: {}]
  %s2 = inlined_call_operand.vmem [shape: f32[1,128], index: 2, kind: input, shape index: {}]
  %s3 = inlined_call_operand.hbm [shape: f32[32,128], index: 3, kind: output, shape index: {}]
  %s4 = sld [smem:[#allocation0]]
  $region61: #{tpu_custom_call.1} parent=0
    _
  %s6 = ssub.s32 1, %s4
  %s7 = scalar_select 0, %s6, %s4
  $region1: #{tpu_custom_call.1} parent=0
    #allocation3 [shape = 'u8[49152]{0}', space=vmem, size = 0xc000, scoped, tag = 'input window, operand 0']
    #allocation4 [shape = 's32[2]{0}', space=sflag, size = 0x8, scoped, tag = 'scoped memory for tpu_custom_call.1']
    #allocation5 [shape = 's32[2]{0}', space=sflag, size = 0x8, scoped, tag = 'scoped memory for tpu_custom_call.1']
    #allocation6 [shape = 'u8[49152]{0}', space=vmem, size = 0xc000, scoped, tag = 'input window, operand 1, single buffered']
    #allocation7 [shape = 's32[1]{0}', space=sflag, size = 0x4, scoped, tag = 'scoped memory for tpu_custom_call.1']
    #allocation8 [shape = 'u8[16384]{0}', space=vmem, size = 0x4000, scoped, tag = 'output window, operand 0']
    %8 = vsyncpa [#allocation4], 0
    %s9 = scalar_lea.sflag [#allocation4], 1
    %10 = vsyncpa %s9, 0
    %11 = vsyncpa [#allocation7], 0
    %12 = vsyncpa [#allocation5], 0
    %s13 = scalar_lea.sflag [#allocation5], 1
    %14 = vsyncpa %s13, 0
    loop: start=0, step=1, limit=4
    $region2: #{tpu_custom_call.1} parent=1 // loop_pre_header
      _
    $region3: #{tpu_custom_call.1} parent=1 // loop_header
      %s16 = sphi 0, %s20
      %p17 = scmp.ge.s32.totalorder %s16, 4
      %s23 = sphi 0, %s35
      %s24 = sphi 0, %s31
      %s25 = sphi 0, %s23
      %s26 = sphi 0, %s24
      %s27 = sphi 0, %s25
      %s28 = sphi 0, %s26
      %s40 = sphi 0, %s42
      %s43 = sphi 0, %s40
      %s44 = sphi 0, %s43
      %s60 = sphi 0, %s44
      %s66 = sphi 0, %s68
      %s69 = sphi 0, %s66
      %s70 = sphi 0, %s69
      %s86 = sphi 0, %s70
      %s90 = sphi 0, %s90
      %s92 = sphi 0, %s90
      %s93 = sphi 0, %s92
      %s107 = sphi 0, %s93
      %s113 = sphi 0, %s115
      %s116 = sphi 0, %s113
      %s117 = sphi 0, %s116
      %s133 = sphi 0, %s117
    $region4: #{tpu_custom_call.1} parent=1 // loop_header_branch
      %19 = sbr.rel (%p17) target = $region8
    $region5: #{tpu_custom_call.1} parent=1 // loop_body
      %s21 = ssub.s32 %s16, 1
      %s22 = ssub.s32 %s16, 2
      %s29 = sadd.s32 1, %s24
      %p30 = scmp.ge.s32.totalorder %s29, 1
      %s31 = scalar_select %p30, 0, %s29
      %s32 = sadd.s32 1, %s23
      %s33 = scalar_select %p30, %s32, %s23
      %p34 = scmp.ge.s32.totalorder %s33, 2
      %s35 = scalar_select %p34, 0, %s33
      %s36 = ssub.s32 %s23, %s35
      %s37 = ssub.s32 %s24, %s31
      %s38 = sor.u32 %s36, %s37
      %p39 = scmp.eq.s32.totalorder %s38, 0
      %s41 = sadd.s32 %s40, 1
      %s42 = scalar_select %p39, %s40, %s41
      %p45 = pneg %p39
      %p46 = scmp.eq.s32.totalorder %s16, 1
      %p47 = por %p45, %p46
      %p48 = scmp.ne.s32.totalorder %s40, %s43
      %p49 = scmp.eq.s32.totalorder %s16, 0
      %p50 = por %p48, %p49
      %p51 = scmp.ne.s32.totalorder %s40, %s43
      %p52 = scmp.eq.s32.totalorder %s21, 1
      %p53 = por %p51, %p52
      %p54 = scmp.ne.s32.totalorder %s43, %s44
      %p55 = scmp.eq.s32.totalorder %s21, 0
      %p56 = por %p54, %p55
      %p57 = scmp.ne.s32.totalorder %s43, %s44
      %p58 = scmp.eq.s32.totalorder %s22, 1
      %p59 = por %p57, %p58
      %p61 = scmp.ne.s32.totalorder %s44, %s60
      %p62 = scmp.eq.s32.totalorder %s22, 0
      %p63 = por %p61, %p62
      %s64 = ssub.s32 %s24, %s31
      %p65 = scmp.eq.s32.totalorder %s64, 0
      %s67 = sadd.s32 %s66, 1
      %s68 = scalar_select %p65, %s66, %s67
      %p71 = pneg %p65
      %p72 = scmp.eq.s32.totalorder %s16, 1
      %p73 = por %p71, %p72
      %p74 = scmp.ne.s32.totalorder %s66, %s69
      %p75 = scmp.eq.s32.totalorder %s16, 0
      %p76 = por %p74, %p75
      %p77 = scmp.ne.s32.totalorder %s66, %s69
      %p78 = scmp.eq.s32.totalorder %s21, 1
      %p79 = por %p77, %p78
      %p80 = scmp.ne.s32.totalorder %s69, %s70
      %p81 = scmp.eq.s32.totalorder %s21, 0
      %p82 = por %p80, %p81
      %p83 = scmp.ne.s32.totalorder %s69, %s70
      %p84 = scmp.eq.s32.totalorder %s22, 1
      %p85 = por %p83, %p84
      %p87 = scmp.ne.s32.totalorder %s70, %s86
      %p88 = scmp.eq.s32.totalorder %s22, 0
      %p89 = por %p87, %p88
      %s91 = sadd.s32 %s90, 1
      %p94 = scmp.eq.s32.totalorder %s16, 1
      %p95 = scmp.ne.s32.totalorder %s90, %s92
      %p96 = scmp.eq.s32.totalorder %s16, 0
      %p97 = por %p95, %p96
      %p98 = scmp.ne.s32.totalorder %s90, %s92
      %p99 = scmp.eq.s32.totalorder %s21, 1
      %p100 = por %p98, %p99
      %p101 = scmp.ne.s32.totalorder %s92, %s93
      %p102 = scmp.eq.s32.totalorder %s21, 0
      %p103 = por %p101, %p102
      %p104 = scmp.ne.s32.totalorder %s92, %s93
      %p105 = scmp.eq.s32.totalorder %s22, 1
      %p106 = por %p104, %p105
      %p108 = scmp.ne.s32.totalorder %s93, %s107
      %p109 = scmp.eq.s32.totalorder %s22, 0
      %p110 = por %p108, %p109
      %s111 = ssub.s32 %s23, %s35
      %p112 = scmp.eq.s32.totalorder %s111, 0
      %s114 = sadd.s32 %s113, 1
      %s115 = scalar_select %p112, %s113, %s114
      %p118 = pneg %p112
      %p119 = scmp.eq.s32.totalorder %s16, 1
      %p120 = por %p118, %p119
      %p121 = scmp.ne.s32.totalorder %s113, %s116
      %p122 = scmp.eq.s32.totalorder %s16, 0
      %p123 = por %p121, %p122
      %p124 = scmp.ne.s32.totalorder %s113, %s116
      %p125 = scmp.eq.s32.totalorder %s21, 1
      %p126 = por %p124, %p125
      %p127 = scmp.ne.s32.totalorder %s116, %s117
      %p128 = scmp.eq.s32.totalorder %s21, 0
      %p129 = por %p127, %p128
      %p130 = scmp.ne.s32.totalorder %s116, %s117
      %p131 = scmp.eq.s32.totalorder %s22, 1
      %p132 = por %p130, %p131
      %p134 = scmp.ne.s32.totalorder %s117, %s133
      %p135 = scmp.eq.s32.totalorder %s22, 0
      %p136 = por %p134, %p135
      %p137 = scmp.le.s32.totalorder 1, %s16
      %p138 = scmp.lt.s32.totalorder %s16, 3
      %p139 = pnand %p137, %p138
      %p140 = pneg %p139
      // Predicated region
      $region9: #{tpu_custom_call.1} parent=5 // pred_check
        _
      $region10: #{tpu_custom_call.1} parent=5 // pred_check_branch
        %142 = sbr.rel (%p139) target = $region12
      $region11: #{tpu_custom_call.1} parent=5 // pred_region
        %s143 = ssub.s32 %s16, 1
        // Predicated region
        $region13: #{tpu_custom_call.1} parent=11 // pred_check
          %p144 = pneg %p82
        $region14: #{tpu_custom_call.1} parent=11 // pred_check_branch
          %146 = sbr.rel (%p144) target = $region16
        $region15: #{tpu_custom_call.1} parent=11 // pred_region
          %s147 = smul.u32 4, %s26
          %149 = vsyncadd [#allocation7], 0
          %s150 = smul.addr %s147, 8
          %s151 = scalar_lea.hbm %s1, %s150
          %s152 = sshll.u32 %s151, 4
          %s153 = int_to_ptr.hbm [resolvable:$true] %s152
          %s154 = sshll.u32 [#allocation6], 4
          %s155 = int_to_ptr.vmem [resolvable:$true] %s154
          %160 = dma.hbm_to_vmem [thread:$0]  %s153, 1536, %s155, [#allocation7], 128, 128, 8
        $region16: #{tpu_custom_call.1} parent=11 // pred_fallthru
          _
        // Predicated region
        $region17: #{tpu_custom_call.1} parent=11 // pred_check
          %p161 = pneg %p103
        $region18: #{tpu_custom_call.1} parent=11 // pred_check_branch
          %163 = sbr.rel (%p161) target = $region20
        $region19: #{tpu_custom_call.1} parent=11 // pred_region
          _
        $region20: #{tpu_custom_call.1} parent=11 // pred_fallthru
          _
      $region12: #{tpu_custom_call.1} parent=5 // pred_fallthru
        _
      %p164 = scmp.lt.s32.totalorder %s16, 2
      // Predicated region
      $region21: #{tpu_custom_call.1} parent=5 // pred_check
        %p165 = pneg %p164
      $region22: #{tpu_custom_call.1} parent=5 // pred_check_branch
        %167 = sbr.rel (%p165) target = $region24
      $region23: #{tpu_custom_call.1} parent=5 // pred_region
        // Predicated region
        $region25: #{tpu_custom_call.1} parent=23 // pred_check
          %p168 = pneg %p50
        $region26: #{tpu_custom_call.1} parent=23 // pred_check_branch
          %170 = sbr.rel (%p168) target = $region28
        $region27: #{tpu_custom_call.1} parent=23 // pred_region
          #allocation10 [shape = 'u32[6]{0}', space=smem, size = 0x18, scoped, tag = 'DMA stride descriptor']
          %s171 = sand.u32 %s40, 1
          %s172 = scalar_lea.sflag [#allocation4], %s171
          %s173 = sand.u32 %s40, 1
          %s174 = smul.addr %s173, 48
          %s175 = scalar_lea.vmem [#allocation3], %s174
          %s176 = smul.u32 2, %s23
          %178 = vsyncadd %s172, 0
          %s179 = sadd.s32 %s24, %s176
          %s180 = smul.addr %s179, 8
          %s181 = scalar_lea.hbm %s0, %s180
          %s183 = sshll.u32 1, 14
          %s184 = sxor.u32 4294967295, %s183
          %s186 = sld [smem:[#allocation0]]
          %s187 = sadd.s32 2, %s186
          %s189 = sshll.u32 7, 26
          %s190 = sxor.u32 4294967295, %s189
          %s191 = sand.u32 0, %s190
          %s192 = sshll.u32 %s187, 26
          %s193 = sor.u32 %s191, %s192
          %s194 = sshll.u32 %s181, 4
          %s195 = int_to_ptr.hbm [resolvable:$true] %s194
          %s196 = sshll.u32 %s175, 4
          %s197 = int_to_ptr.vmem [resolvable:$true] %s196
          %203 = sst [smem:[#allocation10]] 512
          %s204 = scalar_lea.smem [#allocation10], 1
          %205 = sst [smem:[%s204]] 256
          %s206 = scalar_lea.smem [#allocation10], 2
          %207 = sst [smem:[%s206]] 2
          %s208 = scalar_lea.smem [#allocation10], 3
          %209 = sst [smem:[%s208]] 128
          %s210 = scalar_lea.smem [#allocation10], 4
          %211 = sst [smem:[%s210]] 128
          %s212 = scalar_lea.smem [#allocation10], 5
          %213 = sst [smem:[%s212]] 8
          %215 = dma.general %s195, 768, %s197, %s172, [#allocation9], [#allocation10], %s193, 0
        $region28: #{tpu_custom_call.1} parent=23 // pred_fallthru
          _
      $region24: #{tpu_custom_call.1} parent=5 // pred_fallthru
        _
      %p216 = scmp.le.s32.totalorder 1, %s16
      %p217 = scmp.lt.s32.totalorder %s16, 3
      %p218 = pnand %p216, %p217
      %p219 = pneg %p218
      // Predicated region
      $region29: #{tpu_custom_call.1} parent=5 // pred_check
        _
      $region30: #{tpu_custom_call.1} parent=5 // pred_check_branch
        %221 = sbr.rel (%p218) target = $region32
      $region31: #{tpu_custom_call.1} parent=5 // pred_region
        %s222 = ssub.s32 %s16, 1
        %s223 = sand.u32 %s43, 1
        %s224 = scalar_lea.sflag [#allocation4], %s223
        %s225 = sand.u32 %s43, 1
        %s226 = smul.addr %s225, 48
        %s227 = scalar_lea.vmem [#allocation3], %s226
        // Predicated region
        $region33: #{tpu_custom_call.1} parent=31 // pred_check
          %p228 = pneg %p56
        $region34: #{tpu_custom_call.1} parent=31 // pred_check_branch
          %230 = sbr.rel (%p228) target = $region36
        $region35: #{tpu_custom_call.1} parent=31 // pred_region
          %232 = dma.done %s224, 768
        $region36: #{tpu_custom_call.1} parent=31 // pred_fallthru
          _
        // Predicated region
        $region37: #{tpu_custom_call.1} parent=31 // pred_check
          %p233 = pneg %p82
        $region38: #{tpu_custom_call.1} parent=31 // pred_check_branch
          %235 = sbr.rel (%p233) target = $region40
        $region39: #{tpu_custom_call.1} parent=31 // pred_region
          %237 = dma.done [#allocation7], 1536
        $region40: #{tpu_custom_call.1} parent=31 // pred_fallthru
          _
        %s238 = sand.u32 %s43, 1
        %s239 = scalar_lea.sflag [#allocation4], %s238
        %s240 = sand.u32 %s43, 1
        %s241 = smul.addr %s240, 48
        %s242 = scalar_lea.vmem [#allocation3], %s241
        %p243 = pneg %p56
        %p244 = pneg %p53
        %p245 = pneg %p82
        %p246 = pneg %p79
        %p247 = pneg %p103
        %p248 = pneg %p100
        %p249 = pneg %p129
        %p250 = pneg %p126
        %s251 = sand.u32 %s116, 1
        %s252 = scalar_lea.sflag [#allocation5], %s251
        %s253 = sand.u32 %s116, 1
        %s254 = smul.addr %s253, 16
        %s255 = scalar_lea.vmem [#allocation8], %s254
        %s256 = smul.u32 2, %s25
        %s257 = smul.u32 4, %s26
        %s258 = smul.u32 2, %s25
        %p259 = scmp.eq.s32.totalorder %s26, 0
        // Predicated region
        $region41: #{tpu_custom_call.1} parent=31 // pred_check
          %p260 = pneg %p259
        $region42: #{tpu_custom_call.1} parent=31 // pred_check_branch
          %262 = sbr.rel (%p260) target = $region44
        $region43: #{tpu_custom_call.1} parent=31 // pred_region
          %263 = vst [vmem:[#allocation2] sm:$0xff] 0.0
          %264 = vst [vmem:[#allocation2 + $0x8] sm:$0xff] 0.0
        $region44: #{tpu_custom_call.1} parent=31 // pred_fallthru
          _
        %v265 = vld [vmem:[#allocation2] sm:$0xff]
        %v266 = vld [vmem:[#allocation2 + $0x8] sm:$0xff]
        %v267 = vld [vmem:[%s227] sm:$0xff]
        %v268 = vld [vmem:[%s227 + $0x8] sm:$0xff]
        %v269 = vld [vmem:[#allocation6] sm:$0xff]
        %v270 = vld [vmem:[#allocation6 + $0x8] sm:$0xff]
        %v271 = vld [vmem:[#allocation6 + $0x10] sm:$0xff]
        %v272 = vld [vmem:[#allocation6 + $0x18] sm:$0xff]
        %vm273 = vcmask 261120
        %v275 = vsel %vm273, %v267, 0
        %v278 = vsel %vm273, %v268, 0
        %280 = vmatpush.msra.mxu0 0.0
        %281 = vmatpush.msra.mxu0 0.0
        %282 = vmatpush.msra.mxu0 0.0
        %283 = vmatpush.msra.mxu0 0.0
        %284 = vmatpush.msra.mxu0 0.0
        %285 = vmatpush.msra.mxu0 0.0
        %286 = vmatpush.msra.mxu0 0.0
        %287 = vmatpush.msra.mxu0 0.0
        %288 = vmatpush.msra.mxu0 0.0
        %289 = vmatpush.msra.mxu0 0.0
        %290 = vmatpush.msra.mxu0 0.0
        %291 = vmatpush.msra.mxu0 0.0
        %292 = vmatpush.msra.mxu0 %v272
        %293 = vmatpush.msra.mxu0 %v271
        %294 = vmatpush.msra.mxu0 %v270
        %295 = vmatpush.msra.mxu0 %v269
        %296 = vmatmul.f32.gmra.mxu0 %v275
        %v297 = vpop.f32.mrf.mxu0
        %v298 = vadd.f32 0.0, %v297
        %299 = vmatmul.f32.gmra.mxu0 %v278
        %v300 = vpop.f32.mrf.mxu0
        %v301 = vadd.f32 0.0, %v300
        %302 = vdwg.mxu0
        %v303 = vadd.f32 %v265, %v298
        %v304 = vadd.f32 %v266, %v301
        %s305 = scalar_lea.vmem %s227, 16 [#allocation3]
        %v306 = vld [vmem:[%s305] sm:$0xff]
        %v307 = vld [vmem:[%s305 + $0x8] sm:$0xff]
        %s308 = scalar_lea.vmem [#allocation6], 32
        %v309 = vld [vmem:[%s308] sm:$0xff]
        %v310 = vld [vmem:[%s308 + $0x8] sm:$0xff]
        %v311 = vld [vmem:[%s308 + $0x10] sm:$0xff]
        %v312 = vld [vmem:[%s308 + $0x18] sm:$0xff]
        %v314 = vsel %vm273, %v306, 0
        %v317 = vsel %vm273, %v307, 0
        %319 = vmatpush.msra.mxu0 0.0
        %320 = vmatpush.msra.mxu0 0.0
        %321 = vmatpush.msra.mxu0 0.0
        %322 = vmatpush.msra.mxu0 0.0
        %323 = vmatpush.msra.mxu0 0.0
        %324 = vmatpush.msra.mxu0 0.0
        %325 = vmatpush.msra.mxu0 0.0
        %326 = vmatpush.msra.mxu0 0.0
        %327 = vmatpush.msra.mxu0 0.0
        %328 = vmatpush.msra.mxu0 0.0
        %329 = vmatpush.msra.mxu0 0.0
        %330 = vmatpush.msra.mxu0 0.0
        %331 = vmatpush.msra.mxu0 %v312
        %332 = vmatpush.msra.mxu0 %v311
        %333 = vmatpush.msra.mxu0 %v310
        %334 = vmatpush.msra.mxu0 %v309
        %335 = vmatmul.f32.gmra.mxu0 %v314
        %v336 = vpop.f32.mrf.mxu0
        %v337 = vadd.f32 0.0, %v336
        %338 = vmatmul.f32.gmra.mxu0 %v317
        %v339 = vpop.f32.mrf.mxu0
        %v340 = vadd.f32 0.0, %v339
        %341 = vdwg.mxu0
        %v342 = vadd.f32 %v303, %v337
        %v343 = vadd.f32 %v304, %v340
        %s344 = scalar_lea.vmem %s227, 32 [#allocation3]
        %v345 = vld [vmem:[%s344] sm:$0xff]
        %v346 = vld [vmem:[%s344 + $0x8] sm:$0xff]
        %s347 = scalar_lea.vmem [#allocation6], 64
        %v348 = vld [vmem:[%s347] sm:$0xff]
        %v349 = vld [vmem:[%s347 + $0x8] sm:$0xff]
        %v350 = vld [vmem:[%s347 + $0x10] sm:$0xff]
        %v351 = vld [vmem:[%s347 + $0x18] sm:$0xff]
        %v353 = vsel %vm273, %v345, 0
        %v356 = vsel %vm273, %v346, 0
        %358 = vmatpush.msra.mxu0 0.0
        %359 = vmatpush.msra.mxu0 0.0
        %360 = vmatpush.msra.mxu0 0.0
        %361 = vmatpush.msra.mxu0 0.0
        %362 = vmatpush.msra.mxu0 0.0
        %363 = vmatpush.msra.mxu0 0.0
        %364 = vmatpush.msra.mxu0 0.0
        %365 = vmatpush.msra.mxu0 0.0
        %366 = vmatpush.msra.mxu0 0.0
        %367 = vmatpush.msra.mxu0 0.0
        %368 = vmatpush.msra.mxu0 0.0
        %369 = vmatpush.msra.mxu0 0.0
        %370 = vmatpush.msra.mxu0 %v351
        %371 = vmatpush.msra.mxu0 %v350
        %372 = vmatpush.msra.mxu0 %v349
        %373 = vmatpush.msra.mxu0 %v348
        %374 = vmatmul.f32.gmra.mxu0 %v353
        %v375 = vpop.f32.mrf.mxu0
        %v376 = vadd.f32 0.0, %v375
        %377 = vmatmul.f32.gmra.mxu0 %v356
        %v378 = vpop.f32.mrf.mxu0
        %v379 = vadd.f32 0.0, %v378
        %380 = vdwg.mxu0
        %v381 = vadd.f32 %v342, %v376
        %v382 = vadd.f32 %v343, %v379
        %383 = vst [vmem:[#allocation2] sm:$0xff] %v381
        %384 = vst [vmem:[#allocation2 + $0x8] sm:$0xff] %v382
        // Predicated region
        $region45: #{tpu_custom_call.1} parent=31 // pred_check
          %p385 = pneg %p259
        $region46: #{tpu_custom_call.1} parent=31 // pred_check_branch
          %387 = sbr.rel (%p385) target = $region48
        $region47: #{tpu_custom_call.1} parent=31 // pred_region
          %v388 = vld [vmem:[#allocation2] sm:$0xff]
          %v389 = vld [vmem:[#allocation2 + $0x8] sm:$0xff]
          %v390 = vld [vmem:[%s2] sm:$0x1]
          %v392 = vperm.slane %v390, 0
          %v394 = vadd.f32 %v388, %v392
          %v395 = vadd.f32 %v389, %v392
          %396 = vst [vmem:[%s255] sm:$0xff] %v394
          %397 = vst [vmem:[%s255 + $0x8] sm:$0xff] %v395
        $region48: #{tpu_custom_call.1} parent=31 // pred_fallthru
          _
        %s398 = sand.u32 %s116, 1
        %s399 = scalar_lea.sflag [#allocation5], %s398
        %s400 = sand.u32 %s116, 1
        %s401 = smul.addr %s400, 16
        %s402 = scalar_lea.vmem [#allocation8], %s401
        // Predicated region
        $region49: #{tpu_custom_call.1} parent=31 // pred_check
          %p403 = pneg %p126
        $region50: #{tpu_custom_call.1} parent=31 // pred_check_branch
          %405 = sbr.rel (%p403) target = $region52
        $region51: #{tpu_custom_call.1} parent=31 // pred_region
          %s406 = smul.u32 2, %s25
          %408 = vsyncadd %s399, 0
          %s409 = smul.addr %s406, 8
          %s410 = scalar_lea.hbm %s3, %s409
          %s411 = sshll.u32 %s402, 4
          %s412 = int_to_ptr.vmem [resolvable:$true] %s411
          %s413 = sshll.u32 %s410, 4
          %s414 = int_to_ptr.hbm [resolvable:$true] %s413
          %419 = dma.vmem_to_hbm [thread:$0]  %s412, 256, %s414, %s399, 128, 128, 8
        $region52: #{tpu_custom_call.1} parent=31 // pred_fallthru
          _
      $region32: #{tpu_custom_call.1} parent=5 // pred_fallthru
        _
      %p420 = scmp.le.s32.totalorder 2, %s16
      // Predicated region
      $region53: #{tpu_custom_call.1} parent=5 // pred_check
        %p421 = pneg %p420
      $region54: #{tpu_custom_call.1} parent=5 // pred_check_branch
        %423 = sbr.rel (%p421) target = $region56
      $region55: #{tpu_custom_call.1} parent=5 // pred_region
        %s424 = ssub.s32 %s16, 2
        // Predicated region
        $region57: #{tpu_custom_call.1} parent=55 // pred_check
          %p425 = pneg %p132
        $region58: #{tpu_custom_call.1} parent=55 // pred_check_branch
          %427 = sbr.rel (%p425) target = $region60
        $region59: #{tpu_custom_call.1} parent=55 // pred_region
          %s428 = sand.u32 %s117, 1
          %s429 = scalar_lea.sflag [#allocation5], %s428
          %s430 = sand.u32 %s117, 1
          %s431 = smul.addr %s430, 16
          %s432 = scalar_lea.vmem [#allocation8], %s431
          %434 = dma.done %s429, 256
        $region60: #{tpu_custom_call.1} parent=55 // pred_fallthru
          _
      $region56: #{tpu_custom_call.1} parent=5 // pred_fallthru
        _
    $region6: #{tpu_custom_call.1} parent=1 // loop_footer
      %s20 = sadd.s32 1, %s16
    $region7: #{tpu_custom_call.1} parent=1 // loop_footer_branch
      %15 = sbr.rel target = $region3
    $region8: #{tpu_custom_call.1} parent=1 // loop_exit
      _
    %435 = vsyncpa [#allocation4], 1
    %s436 = scalar_lea.sflag [#allocation4], 1
    %437 = vsyncpa %s436, 1
    %438 = vsyncpa [#allocation7], 1
    %439 = vsyncpa [#allocation5], 1
    %s440 = scalar_lea.sflag [#allocation5], 1
    %441 = vsyncpa %s440, 1

</llo_original>
